<compile_context>
chip_gen: v6e
topology: v6e:2x2x1
jax: 0.10.0
libtpu: 0.0.40
codegen_flags: <defaults>
</compile_context>

<pallas_src>
import functools

import jax
import jax.numpy as jnp
from jax.experimental import pallas as pl
from jax.experimental.pallas import tpu as pltpu


def _decomp_kernel(x_ref, res_ref, mean_ref, xpad_ref, *, k):
    # x_ref   : (1, L, tC)  full sequence, one lane-tile of channels
    # xpad_ref: (1, L + 2*pad, tC) f32 VMEM scratch for the edge-padded series
    x = x_ref[...].astype(jnp.float32)
    L = x_ref.shape[1]
    tC = x_ref.shape[2]
    pad = (k - 1) // 2

    if pad == 0:
        # Degenerate kernel_size == 1: moving mean is the series itself.
        mean = x
    else:
        # Edge-replication padding built entirely in VMEM (never touches HBM).
        xpad_ref[:, pad:pad + L, :] = x
        xpad_ref[:, 0:pad, :] = jnp.broadcast_to(x[:, 0:1, :], (1, pad, tC))
        xpad_ref[:, pad + L:pad + L + pad, :] = jnp.broadcast_to(
            x[:, L - 1:L, :], (1, pad, tC))

        # AvgPool1d(kernel_size=k, stride=1): sum of k statically-shifted
        # slices of the padded series, then scale by 1/k.
        acc = xpad_ref[:, 0:L, :]
        for i in range(1, k):  # static unroll; k is a Python int
            acc = acc + xpad_ref[:, i:i + L, :]
        mean = acc * (1.0 / k)

    mean_ref[...] = mean.astype(mean_ref.dtype)
    res_ref[...] = (x - mean).astype(res_ref.dtype)


def _choose_channel_tile(C, L, max_channel_tile):
    """Pick a lane-dense channel tile (multiple of 128 that divides C) if possible."""
    if C < 128 or C % 128 != 0:
        # Too few channels to fill lanes (or ragged count): take them all.
        return C
    # Multiples of 128 that divide C, largest first, capped at max_channel_tile.
    cands = [m for m in range(C, 127, -128)
             if C % m == 0 and m <= max_channel_tile]
    if not cands:
        cands = [m for m in range(C, 127, -128) if C % m == 0]
    # Prefer the largest tile whose f32 working block stays modest (~2 MiB).
    for m in cands:
        if L * m * 4 <= (2 << 20):
            return m
    return cands[-1]


def series_decomp(x, kernel_size, *, max_channel_tile=512):
    """JAX/Pallas equivalent of the PyTorch series_decomp.forward.

    Args:
      x: (B, L, C) array (batch, sequence length, channels).
      kernel_size: odd int (the PyTorch module implicitly requires odd k).
      max_channel_tile: cap on the per-block channel (lane) tile.

    Returns:
      (res, moving_mean), both (B, L, C), res = x - moving_mean.
    """
    assert kernel_size % 2 == 1, "series_decomp requires an odd kernel_size"
    B, L, C = x.shape
    pad = (kernel_size - 1) // 2

    tC = _choose_channel_tile(C, L, max_channel_tile)
    nC = C // tC  # exact by construction of _choose_channel_tile

    # VMEM budget: 1 input + 2 outputs double-buffered, plus the f32 padded
    # scratch and headroom for in-kernel temporaries.  Sized well under v7x's
    # 64 MiB physical VMEM; never set below the v6e/v7x default (32 MiB).
    itemsize = jnp.dtype(x.dtype).itemsize
    est = (6 * L * tC * itemsize            # double-buffered I/O blocks
           + 4 * (L + 2 * pad) * tC * 4)    # f32 scratch + temporaries
    vmem_limit = int(min(48 * 2**20, max(32 * 2**20, 2 * est)))

    kernel = functools.partial(_decomp_kernel, k=kernel_size)
    blk = pl.BlockSpec((1, L, tC), lambda b, c: (b, 0, c))

    res, mean = pl.pallas_call(
        kernel,
        out_shape=(
            jax.ShapeDtypeStruct((B, L, C), x.dtype),
            jax.ShapeDtypeStruct((B, L, C), x.dtype),
        ),
        grid=(B, nC),
        in_specs=[blk],
        out_specs=(blk, blk),
        scratch_shapes=[pltpu.VMEM((1, L + 2 * pad, tC), jnp.float32)],
        compiler_params=pltpu.CompilerParams(
            dimension_semantics=("parallel", "parallel"),
            vmem_limit_bytes=vmem_limit,
        ),
    )(x)
    return res, mean


def _reference(x, kernel_size):
    """Pure-JAX (f32) reference mirroring the PyTorch forward exactly."""
    pad = (kernel_size - 1) // 2
    xf = x.astype(jnp.float32)
    front = jnp.repeat(xf[:, 0:1, :], pad, axis=1)
    end = jnp.repeat(xf[:, -1:, :], pad, axis=1)
    xpad = jnp.concatenate([front, xf, end], axis=1)
    L = x.shape[1]
    mean = jnp.stack(
        [xpad[:, i:i + L, :] for i in range(kernel_size)], axis=0
    ).mean(axis=0)
    return xf - mean, mean


if __name__ == "__main__":
    key = jax.random.PRNGKey(0)

    checks = [
        # (B, L, C, kernel_size, dtype, max_channel_tile)
        (2, 16, 32, 5, jnp.float32, 512),    # C < 128: full-C block (masked stores)
        (2, 48, 256, 25, jnp.float32, 128),  # lane-dense path, 2 channel tiles
        (2, 32, 128, 7, jnp.bfloat16, 512),  # bf16 I/O, f32 accumulation
    ]

    for (B, L, C, k, dtype, mct) in checks:
        key, sub = jax.random.split(key)
        x = jax.random.normal(sub, (B, L, C), dtype=jnp.float32).astype(dtype)

        res, mean = series_decomp(x, k, max_channel_tile=mct)
        res = jax.block_until_ready(res)
        mean = jax.block_until_ready(mean)

        res_ref, mean_ref = _reference(x, k)
        tol = 1e-5 if dtype == jnp.float32 else 3e-2
        assert res.shape == (B, L, C) and mean.shape == (B, L, C)
        assert jnp.allclose(res.astype(jnp.float32), res_ref, atol=tol, rtol=tol)
        assert jnp.allclose(mean.astype(jnp.float32), mean_ref, atol=tol, rtol=tol)

    print("KERNEL_OK")
</pallas_src>

<mosaic_0001>
module attributes {stable_mosaic.version = 11 : i64} {
  func.func @_decomp_kernel(%arg0: i32, %arg1: i32, %arg2: memref<1x16x32xf32, #tpu.memory_space<vmem>>, %arg3: memref<1x16x32xf32, #tpu.memory_space<vmem>>, %arg4: memref<1x16x32xf32, #tpu.memory_space<vmem>>, %arg5: memref<1x20x32xf32, #tpu.memory_space<vmem>>) attributes {dimension_semantics = [#tpu.dimension_semantics<parallel>, #tpu.dimension_semantics<parallel>], iteration_bounds = array<i64: 2, 1>, scalar_prefetch = 0 : i64, scratch_operands = 1 : i64, tpu.core_type = #tpu.core_type<tc>, window_params = [{transform_indices = @transform_0, window_bounds = array<i64: 1, 16, 32>}, {transform_indices = @transform_1, window_bounds = array<i64: 1, 16, 32>}, {transform_indices = @transform_2, window_bounds = array<i64: 1, 16, 32>}]} {
    %c0 = arith.constant 0 : index
    %c0_0 = arith.constant 0 : index
    %c0_1 = arith.constant 0 : index
    %0 = vector.load %arg2[%c0, %c0_0, %c0_1] : memref<1x16x32xf32, #tpu.memory_space<vmem>>, vector<1x16x32xf32>
    %c0_2 = arith.constant 0 : index
    %c2 = arith.constant 2 : index
    %c0_3 = arith.constant 0 : index
    %1 = vector.load %arg5[%c0_2, %c2, %c0_3] : memref<1x20x32xf32, #tpu.memory_space<vmem>>, vector<1x16x32xf32>
    tpu.vector_store %arg5[%c0_2, %c2, %c0_3], %0 {strides = array<i32>} : memref<1x20x32xf32, #tpu.memory_space<vmem>>, vector<1x16x32xf32>,
    %2 = vector.extract_strided_slice %0 {offsets = [0, 0, 0], sizes = [1, 1, 32], strides = [1, 1, 1]} : vector<1x16x32xf32> to vector<1x1x32xf32>
    %3 = vector.shape_cast %2 : vector<1x1x32xf32> to vector<1x1x32xf32>
    %4 = vector.broadcast %3 : vector<1x1x32xf32> to vector<1x2x32xf32>
    %c0_4 = arith.constant 0 : index
    %c0_5 = arith.constant 0 : index
    %c0_6 = arith.constant 0 : index
    %5 = vector.load %arg5[%c0_4, %c0_5, %c0_6] : memref<1x20x32xf32, #tpu.memory_space<vmem>>, vector<1x2x32xf32>
    tpu.vector_store %arg5[%c0_4, %c0_5, %c0_6], %4 {strides = array<i32>} : memref<1x20x32xf32, #tpu.memory_space<vmem>>, vector<1x2x32xf32>,
    %6 = vector.extract_strided_slice %0 {offsets = [0, 15, 0], sizes = [1, 1, 32], strides = [1, 1, 1]} : vector<1x16x32xf32> to vector<1x1x32xf32>
    %7 = vector.shape_cast %6 : vector<1x1x32xf32> to vector<1x1x32xf32>
    %8 = vector.broadcast %7 : vector<1x1x32xf32> to vector<1x2x32xf32>
    %c0_7 = arith.constant 0 : index
    %c18 = arith.constant 18 : index
    %c0_8 = arith.constant 0 : index
    %9 = vector.load %arg5[%c0_7, %c18, %c0_8] : memref<1x20x32xf32, #tpu.memory_space<vmem>>, vector<1x2x32xf32>
    tpu.vector_store %arg5[%c0_7, %c18, %c0_8], %8 {strides = array<i32>} : memref<1x20x32xf32, #tpu.memory_space<vmem>>, vector<1x2x32xf32>,
    %c0_9 = arith.constant 0 : index
    %c0_10 = arith.constant 0 : index
    %c0_11 = arith.constant 0 : index
    %10 = vector.load %arg5[%c0_9, %c0_10, %c0_11] : memref<1x20x32xf32, #tpu.memory_space<vmem>>, vector<1x16x32xf32>
    %c0_12 = arith.constant 0 : index
    %c1 = arith.constant 1 : index
    %c0_13 = arith.constant 0 : index
    %11 = vector.load %arg5[%c0_12, %c1, %c0_13] : memref<1x20x32xf32, #tpu.memory_space<vmem>>, vector<1x16x32xf32>
    %12 = arith.addf %10, %11 : vector<1x16x32xf32>
    %c0_14 = arith.constant 0 : index
    %c2_15 = arith.constant 2 : index
    %c0_16 = arith.constant 0 : index
    %13 = vector.load %arg5[%c0_14, %c2_15, %c0_16] : memref<1x20x32xf32, #tpu.memory_space<vmem>>, vector<1x16x32xf32>
    %14 = arith.addf %12, %13 : vector<1x16x32xf32>
    %c0_17 = arith.constant 0 : index
    %c3 = arith.constant 3 : index
    %c0_18 = arith.constant 0 : index
    %15 = vector.load %arg5[%c0_17, %c3, %c0_18] : memref<1x20x32xf32, #tpu.memory_space<vmem>>, vector<1x16x32xf32>
    %16 = arith.addf %14, %15 : vector<1x16x32xf32>
    %c0_19 = arith.constant 0 : index
    %c4 = arith.constant 4 : index
    %c0_20 = arith.constant 0 : index
    %17 = vector.load %arg5[%c0_19, %c4, %c0_20] : memref<1x20x32xf32, #tpu.memory_space<vmem>>, vector<1x16x32xf32>
    %18 = arith.addf %16, %17 : vector<1x16x32xf32>
    %cst = arith.constant 2.000000e-01 : f32
    %19 = vector.broadcast %cst : f32 to vector<1x16x32xf32>
    %20 = arith.mulf %18, %19 : vector<1x16x32xf32>
    %c0_21 = arith.constant 0 : index
    %c0_22 = arith.constant 0 : index
    %c0_23 = arith.constant 0 : index
    %21 = vector.load %arg4[%c0_21, %c0_22, %c0_23] : memref<1x16x32xf32, #tpu.memory_space<vmem>>, vector<1x16x32xf32>
    tpu.vector_store %arg4[%c0_21, %c0_22, %c0_23], %20 {strides = array<i32>} : memref<1x16x32xf32, #tpu.memory_space<vmem>>, vector<1x16x32xf32>,
    %22 = arith.subf %0, %20 : vector<1x16x32xf32>
    %c0_24 = arith.constant 0 : index
    %c0_25 = arith.constant 0 : index
    %c0_26 = arith.constant 0 : index
    %23 = vector.load %arg3[%c0_24, %c0_25, %c0_26] : memref<1x16x32xf32, #tpu.memory_space<vmem>>, vector<1x16x32xf32>
    tpu.vector_store %arg3[%c0_24, %c0_25, %c0_26], %22 {strides = array<i32>} : memref<1x16x32xf32, #tpu.memory_space<vmem>>, vector<1x16x32xf32>,
    return
  }
  func.func @transform_0(%arg0: i32, %arg1: i32) -> (i32, i32, i32) {
    %c0_i32 = arith.constant 0 : i32
    %c0_i32_0 = arith.constant 0 : i32
    return %arg0, %c0_i32, %arg1 : i32, i32, i32
  }
  func.func @transform_1(%arg0: i32, %arg1: i32) -> (i32, i32, i32) {
    %c0_i32 = arith.constant 0 : i32
    %c0_i32_0 = arith.constant 0 : i32
    return %arg0, %c0_i32, %arg1 : i32, i32, i32
  }
  func.func @transform_2(%arg0: i32, %arg1: i32) -> (i32, i32, i32) {
    %c0_i32 = arith.constant 0 : i32
    %c0_i32_0 = arith.constant 0 : i32
    return %arg0, %c0_i32, %arg1 : i32, i32, i32
  }
}

</mosaic_0001>

<llo_original>
// kernel: tpu_custom_call.1
$region0: #{tpu_custom_call.1}
  #allocation0 [shape = 'u32[]', space=smem, size = 0x4, offset = 0x4, fixed_abs, tag = 'smem constant byte address 0x4 - core index']
  #allocation1 [shape = 'u32[144,128]{1,0:T(1,128)}', space=vmem, size = 0x12000, scoped, tag = 'internal scratch']
  #allocation2 [shape = 'f32[1,20,32]{2,1,0:T(8,128)}', space=vmem, size = 0x3000, scoped, tag = 'scratch operand']
  %s0 = inlined_call_operand.hbm [shape: f32[2,16,32], index: 0, kind: input, shape index: {}]
  %s1 = inlined_call_operand.hbm [shape: f32[2,16,32], index: 1, kind: output, shape index: {0}]
  %s2 = inlined_call_operand.hbm [shape: f32[2,16,32], index: 2, kind: output, shape index: {1}]
  %3 = xla_tuple %s1, %s2
  %s4 = sld [smem:[#allocation0]]
  $region49: #{tpu_custom_call.1} parent=0
    _
  %s6 = ssub.s32 1, %s4
  %s7 = scalar_select 0, %s6, %s4
  $region1: #{tpu_custom_call.1} parent=0
    #allocation3 [shape = 'u8[16384]{0}', space=vmem, size = 0x4000, scoped, tag = 'input window, operand 0']
    #allocation4 [shape = 's32[2]{0}', space=sflag, size = 0x8, scoped, tag = 'scoped memory for tpu_custom_call.1']
    #allocation5 [shape = 's32[2]{0}', space=sflag, size = 0x8, scoped, tag = 'scoped memory for tpu_custom_call.1']
    #allocation6 [shape = 'u8[16384]{0}', space=vmem, size = 0x4000, scoped, tag = 'output window, operand 0']
    #allocation7 [shape = 'u8[16384]{0}', space=vmem, size = 0x4000, scoped, tag = 'output window, operand 1']
    #allocation8 [shape = 's32[2]{0}', space=sflag, size = 0x8, scoped, tag = 'scoped memory for tpu_custom_call.1']
    %8 = vsyncpa [#allocation4], 0
    %s9 = scalar_lea.sflag [#allocation4], 1
    %10 = vsyncpa %s9, 0
    %11 = vsyncpa [#allocation5], 0
    %s12 = scalar_lea.sflag [#allocation5], 1
    %13 = vsyncpa %s12, 0
    %14 = vsyncpa [#allocation8], 0
    %s15 = scalar_lea.sflag [#allocation8], 1
    %16 = vsyncpa %s15, 0
    loop: start=0, step=1, limit=4
    $region2: #{tpu_custom_call.1} parent=1 // loop_pre_header
      _
    $region3: #{tpu_custom_call.1} parent=1 // loop_header
      %s18 = sphi 0, %s22
      %p19 = scmp.ge.s32.totalorder %s18, 4
      %s25 = sphi 0, %s37
      %s26 = sphi 0, %s33
      %s27 = sphi 0, %s25
      %s28 = sphi 0, %s26
      %s29 = sphi 0, %s27
      %s30 = sphi 0, %s28
      %s42 = sphi 0, %s44
      %s45 = sphi 0, %s42
      %s46 = sphi 0, %s45
      %s62 = sphi 0, %s46
      %s70 = sphi 0, %s72
      %s73 = sphi 0, %s70
      %s74 = sphi 0, %s73
      %s90 = sphi 0, %s74
      %s98 = sphi 0, %s100
      %s101 = sphi 0, %s98
      %s102 = sphi 0, %s101
      %s118 = sphi 0, %s102
    $region4: #{tpu_custom_call.1} parent=1 // loop_header_branch
      %21 = sbr.rel (%p19) target = $region8
    $region5: #{tpu_custom_call.1} parent=1 // loop_body
      %s23 = ssub.s32 %s18, 1
      %s24 = ssub.s32 %s18, 2
      %s31 = sadd.s32 1, %s26
      %p32 = scmp.ge.s32.totalorder %s31, 1
      %s33 = scalar_select %p32, 0, %s31
      %s34 = sadd.s32 1, %s25
      %s35 = scalar_select %p32, %s34, %s25
      %p36 = scmp.ge.s32.totalorder %s35, 2
      %s37 = scalar_select %p36, 0, %s35
      %s38 = ssub.s32 %s25, %s37
      %s39 = ssub.s32 %s26, %s33
      %s40 = sor.u32 %s38, %s39
      %p41 = scmp.eq.s32.totalorder %s40, 0
      %s43 = sadd.s32 %s42, 1
      %s44 = scalar_select %p41, %s42, %s43
      %p47 = pneg %p41
      %p48 = scmp.eq.s32.totalorder %s18, 1
      %p49 = por %p47, %p48
      %p50 = scmp.ne.s32.totalorder %s42, %s45
      %p51 = scmp.eq.s32.totalorder %s18, 0
      %p52 = por %p50, %p51
      %p53 = scmp.ne.s32.totalorder %s42, %s45
      %p54 = scmp.eq.s32.totalorder %s23, 1
      %p55 = por %p53, %p54
      %p56 = scmp.ne.s32.totalorder %s45, %s46
      %p57 = scmp.eq.s32.totalorder %s23, 0
      %p58 = por %p56, %p57
      %p59 = scmp.ne.s32.totalorder %s45, %s46
      %p60 = scmp.eq.s32.totalorder %s24, 1
      %p61 = por %p59, %p60
      %p63 = scmp.ne.s32.totalorder %s46, %s62
      %p64 = scmp.eq.s32.totalorder %s24, 0
      %p65 = por %p63, %p64
      %s66 = ssub.s32 %s25, %s37
      %s67 = ssub.s32 %s26, %s33
      %s68 = sor.u32 %s66, %s67
      %p69 = scmp.eq.s32.totalorder %s68, 0
      %s71 = sadd.s32 %s70, 1
      %s72 = scalar_select %p69, %s70, %s71
      %p75 = pneg %p69
      %p76 = scmp.eq.s32.totalorder %s18, 1
      %p77 = por %p75, %p76
      %p78 = scmp.ne.s32.totalorder %s70, %s73
      %p79 = scmp.eq.s32.totalorder %s18, 0
      %p80 = por %p78, %p79
      %p81 = scmp.ne.s32.totalorder %s70, %s73
      %p82 = scmp.eq.s32.totalorder %s23, 1
      %p83 = por %p81, %p82
      %p84 = scmp.ne.s32.totalorder %s73, %s74
      %p85 = scmp.eq.s32.totalorder %s23, 0
      %p86 = por %p84, %p85
      %p87 = scmp.ne.s32.totalorder %s73, %s74
      %p88 = scmp.eq.s32.totalorder %s24, 1
      %p89 = por %p87, %p88
      %p91 = scmp.ne.s32.totalorder %s74, %s90
      %p92 = scmp.eq.s32.totalorder %s24, 0
      %p93 = por %p91, %p92
      %s94 = ssub.s32 %s25, %s37
      %s95 = ssub.s32 %s26, %s33
      %s96 = sor.u32 %s94, %s95
      %p97 = scmp.eq.s32.totalorder %s96, 0
      %s99 = sadd.s32 %s98, 1
      %s100 = scalar_select %p97, %s98, %s99
      %p103 = pneg %p97
      %p104 = scmp.eq.s32.totalorder %s18, 1
      %p105 = por %p103, %p104
      %p106 = scmp.ne.s32.totalorder %s98, %s101
      %p107 = scmp.eq.s32.totalorder %s18, 0
      %p108 = por %p106, %p107
      %p109 = scmp.ne.s32.totalorder %s98, %s101
      %p110 = scmp.eq.s32.totalorder %s23, 1
      %p111 = por %p109, %p110
      %p112 = scmp.ne.s32.totalorder %s101, %s102
      %p113 = scmp.eq.s32.totalorder %s23, 0
      %p114 = por %p112, %p113
      %p115 = scmp.ne.s32.totalorder %s101, %s102
      %p116 = scmp.eq.s32.totalorder %s24, 1
      %p117 = por %p115, %p116
      %p119 = scmp.ne.s32.totalorder %s102, %s118
      %p120 = scmp.eq.s32.totalorder %s24, 0
      %p121 = por %p119, %p120
      %p122 = scmp.le.s32.totalorder 1, %s18
      %p123 = scmp.lt.s32.totalorder %s18, 3
      %p124 = pnand %p122, %p123
      %p125 = pneg %p124
      // Predicated region
      $region9: #{tpu_custom_call.1} parent=5 // pred_check
        _
      $region10: #{tpu_custom_call.1} parent=5 // pred_check_branch
        %127 = sbr.rel (%p124) target = $region12
      $region11: #{tpu_custom_call.1} parent=5 // pred_region
        %s128 = ssub.s32 %s18, 1
      $region12: #{tpu_custom_call.1} parent=5 // pred_fallthru
        _
      %p129 = scmp.lt.s32.totalorder %s18, 2
      // Predicated region
      $region13: #{tpu_custom_call.1} parent=5 // pred_check
        %p130 = pneg %p129
      $region14: #{tpu_custom_call.1} parent=5 // pred_check_branch
        %132 = sbr.rel (%p130) target = $region16
      $region15: #{tpu_custom_call.1} parent=5 // pred_region
        // Predicated region
        $region17: #{tpu_custom_call.1} parent=15 // pred_check
          %p133 = pneg %p52
        $region18: #{tpu_custom_call.1} parent=15 // pred_check_branch
          %135 = sbr.rel (%p133) target = $region20
        $region19: #{tpu_custom_call.1} parent=15 // pred_region
          %s136 = sand.u32 %s42, 1
          %s137 = scalar_lea.sflag [#allocation4], %s136
          %s138 = sand.u32 %s42, 1
          %s139 = smul.addr %s138, 16
          %s140 = scalar_lea.vmem [#allocation3], %s139
          %s142 = ssub.s32 256, 256
          %143 = vsyncadd %s137, %s142
          %s144 = smul.addr %s25, 2
          %s145 = sadd.s32 %s26, %s144
          %s146 = smul.addr %s145, 128
          %s147 = scalar_lea.hbm %s0, %s146
          %s148 = sshll.u32 %s140, 4
          %s149 = int_to_ptr.vmem [resolvable:$true] %s148
          %154 = dma.hbm_to_vmem [thread:$0]  %s147, 256, %s149, %s137, 128, 128, 8
        $region20: #{tpu_custom_call.1} parent=15 // pred_fallthru
          _
      $region16: #{tpu_custom_call.1} parent=5 // pred_fallthru
        _
      %p155 = scmp.le.s32.totalorder 1, %s18
      %p156 = scmp.lt.s32.totalorder %s18, 3
      %p157 = pnand %p155, %p156
      %p158 = pneg %p157
      // Predicated region
      $region21: #{tpu_custom_call.1} parent=5 // pred_check
        _
      $region22: #{tpu_custom_call.1} parent=5 // pred_check_branch
        %160 = sbr.rel (%p157) target = $region24
      $region23: #{tpu_custom_call.1} parent=5 // pred_region
        %s161 = ssub.s32 %s18, 1
        %s162 = sand.u32 %s45, 1
        %s163 = scalar_lea.sflag [#allocation4], %s162
        %s164 = sand.u32 %s45, 1
        %s165 = smul.addr %s164, 16
        %s166 = scalar_lea.vmem [#allocation3], %s165
        // Predicated region
        $region25: #{tpu_custom_call.1} parent=23 // pred_check
          %p167 = pneg %p58
        $region26: #{tpu_custom_call.1} parent=23 // pred_check_branch
          %169 = sbr.rel (%p167) target = $region28
        $region27: #{tpu_custom_call.1} parent=23 // pred_region
          %170 = dma.done %s163, 256
        $region28: #{tpu_custom_call.1} parent=23 // pred_fallthru
          _
        %s171 = sand.u32 %s45, 1
        %s172 = scalar_lea.sflag [#allocation4], %s171
        %s173 = sand.u32 %s45, 1
        %s174 = smul.addr %s173, 16
        %s175 = scalar_lea.vmem [#allocation3], %s174
        %p176 = pneg %p58
        %p177 = pneg %p55
        %p178 = pneg %p86
        %p179 = pneg %p83
        %s180 = sand.u32 %s73, 1
        %s181 = scalar_lea.sflag [#allocation5], %s180
        %s182 = sand.u32 %s73, 1
        %s183 = smul.addr %s182, 16
        %s184 = scalar_lea.vmem [#allocation6], %s183
        %p185 = pneg %p114
        %p186 = pneg %p111
        %s187 = sand.u32 %s101, 1
        %s188 = scalar_lea.sflag [#allocation8], %s187
        %s189 = sand.u32 %s101, 1
        %s190 = smul.addr %s189, 16
        %s191 = scalar_lea.vmem [#allocation7], %s190
        %v192 = vld [vmem:[%s166] sm:$0xff]
        %v193 = vld [vmem:[%s166 + $0x8] sm:$0xff]
        %vm194 = vcmask 261120
        %195 = vst.msk [vmem:[#allocation2 + $0x2] sm:$0xff] %vm194, %v192
        %196 = vst.msk [vmem:[#allocation2 + $0xa] sm:$0xff] %vm194, %v193
        %v197 = vlaneseq
        %v198 = vshrl.u32 %v197, 7
        %v199 = vsub.s32 0, %v198
        %v200 = vrot.slane %v192, %v199
        %vm201 = vcmask 254976
        %202 = vst.msk [vmem:[#allocation2] sm:$0x3] %vm201, %v200
        %v203 = vlaneseq
        %v204 = vshrl.u32 %v203, 7
        %v205 = vsub.s32 7, %v204
        %v206 = vrot.slane %v193, %v205
        %207 = vst.msk [vmem:[#allocation2 + $0x12] sm:$0x3] %vm201, %v206
        %v208 = vld [vmem:[#allocation2] sm:$0xff]
        %v209 = vld [vmem:[#allocation2 + $0x8] sm:$0xff]
        %v210 = vld [vmem:[#allocation2 + $0x1] sm:$0xff]
        %v211 = vld [vmem:[#allocation2 + $0x9] sm:$0xff]
        %v212 = vadd.f32 %v208, %v210
        %v213 = vadd.f32 %v209, %v211
        %v214 = vld [vmem:[#allocation2 + $0x2] sm:$0xff]
        %v215 = vld [vmem:[#allocation2 + $0xa] sm:$0xff]
        %v216 = vadd.f32 %v212, %v214
        %v217 = vadd.f32 %v213, %v215
        %v218 = vld [vmem:[#allocation2 + $0x3] sm:$0xff]
        %v219 = vld [vmem:[#allocation2 + $0xb] sm:$0xff]
        %v220 = vadd.f32 %v216, %v218
        %v221 = vadd.f32 %v217, %v219
        %v222 = vld [vmem:[#allocation2 + $0x4] sm:$0xff]
        %v223 = vld [vmem:[#allocation2 + $0xc] sm:$0xff]
        %v224 = vadd.f32 %v220, %v222
        %v225 = vadd.f32 %v221, %v223
        %v226 = vmul.f32 %v224, 0.2
        %v227 = vmul.f32 %v225, 0.2
        %228 = vst.msk [vmem:[%s191] sm:$0xff] %vm194, %v226
        %229 = vst.msk [vmem:[%s191 + $0x8] sm:$0xff] %vm194, %v227
        %v230 = vsub.f32 %v192, %v226
        %v231 = vsub.f32 %v193, %v227
        %232 = vst.msk [vmem:[%s184] sm:$0xff] %vm194, %v230
        %233 = vst.msk [vmem:[%s184 + $0x8] sm:$0xff] %vm194, %v231
        %s234 = sand.u32 %s73, 1
        %s235 = scalar_lea.sflag [#allocation5], %s234
        %s236 = sand.u32 %s73, 1
        %s237 = smul.addr %s236, 16
        %s238 = scalar_lea.vmem [#allocation6], %s237
        %s239 = sand.u32 %s101, 1
        %s240 = scalar_lea.sflag [#allocation8], %s239
        %s241 = sand.u32 %s101, 1
        %s242 = smul.addr %s241, 16
        %s243 = scalar_lea.vmem [#allocation7], %s242
        // Predicated region
        $region29: #{tpu_custom_call.1} parent=23 // pred_check
          %p244 = pneg %p83
        $region30: #{tpu_custom_call.1} parent=23 // pred_check_branch
          %246 = sbr.rel (%p244) target = $region32
        $region31: #{tpu_custom_call.1} parent=23 // pred_region
          %s248 = ssub.s32 256, 256
          %249 = vsyncadd %s235, %s248
          %s250 = smul.addr %s27, 2
          %s251 = sadd.s32 %s28, %s250
          %s252 = smul.addr %s251, 128
          %s253 = scalar_lea.hbm %s1, %s252
          %s254 = sshll.u32 %s238, 4
          %s255 = int_to_ptr.vmem [resolvable:$true] %s254
          %260 = dma.vmem_to_hbm [thread:$0]  %s255, 256, %s253, %s235, 128, 128, 8
        $region32: #{tpu_custom_call.1} parent=23 // pred_fallthru
          _
        // Predicated region
        $region33: #{tpu_custom_call.1} parent=23 // pred_check
          %p261 = pneg %p111
        $region34: #{tpu_custom_call.1} parent=23 // pred_check_branch
          %263 = sbr.rel (%p261) target = $region36
        $region35: #{tpu_custom_call.1} parent=23 // pred_region
          %s265 = ssub.s32 256, 256
          %266 = vsyncadd %s240, %s265
          %s267 = smul.addr %s27, 2
          %s268 = sadd.s32 %s28, %s267
          %s269 = smul.addr %s268, 128
          %s270 = scalar_lea.hbm %s2, %s269
          %s271 = sshll.u32 %s243, 4
          %s272 = int_to_ptr.vmem [resolvable:$true] %s271
          %277 = dma.vmem_to_hbm [thread:$0]  %s272, 256, %s270, %s240, 128, 128, 8
        $region36: #{tpu_custom_call.1} parent=23 // pred_fallthru
          _
      $region24: #{tpu_custom_call.1} parent=5 // pred_fallthru
        _
      %p278 = scmp.le.s32.totalorder 2, %s18
      // Predicated region
      $region37: #{tpu_custom_call.1} parent=5 // pred_check
        %p279 = pneg %p278
      $region38: #{tpu_custom_call.1} parent=5 // pred_check_branch
        %281 = sbr.rel (%p279) target = $region40
      $region39: #{tpu_custom_call.1} parent=5 // pred_region
        %s282 = ssub.s32 %s18, 2
        // Predicated region
        $region41: #{tpu_custom_call.1} parent=39 // pred_check
          %p283 = pneg %p89
        $region42: #{tpu_custom_call.1} parent=39 // pred_check_branch
          %285 = sbr.rel (%p283) target = $region44
        $region43: #{tpu_custom_call.1} parent=39 // pred_region
          %s286 = sand.u32 %s74, 1
          %s287 = scalar_lea.sflag [#allocation5], %s286
          %s288 = sand.u32 %s74, 1
          %s289 = smul.addr %s288, 16
          %s290 = scalar_lea.vmem [#allocation6], %s289
          %291 = dma.done %s287, 256
        $region44: #{tpu_custom_call.1} parent=39 // pred_fallthru
          _
        // Predicated region
        $region45: #{tpu_custom_call.1} parent=39 // pred_check
          %p292 = pneg %p117
        $region46: #{tpu_custom_call.1} parent=39 // pred_check_branch
          %294 = sbr.rel (%p292) target = $region48
        $region47: #{tpu_custom_call.1} parent=39 // pred_region
          %s295 = sand.u32 %s102, 1
          %s296 = scalar_lea.sflag [#allocation8], %s295
          %s297 = sand.u32 %s102, 1
          %s298 = smul.addr %s297, 16
          %s299 = scalar_lea.vmem [#allocation7], %s298
          %300 = dma.done %s296, 256
        $region48: #{tpu_custom_call.1} parent=39 // pred_fallthru
          _
      $region40: #{tpu_custom_call.1} parent=5 // pred_fallthru
        _
    $region6: #{tpu_custom_call.1} parent=1 // loop_footer
      %s22 = sadd.s32 1, %s18
    $region7: #{tpu_custom_call.1} parent=1 // loop_footer_branch
      %17 = sbr.rel target = $region3
    $region8: #{tpu_custom_call.1} parent=1 // loop_exit
      _
    %301 = vsyncpa [#allocation4], 1
    %s302 = scalar_lea.sflag [#allocation4], 1
    %303 = vsyncpa %s302, 1
    %304 = vsyncpa [#allocation5], 1
    %s305 = scalar_lea.sflag [#allocation5], 1
    %306 = vsyncpa %s305, 1
    %307 = vsyncpa [#allocation8], 1
    %s308 = scalar_lea.sflag [#allocation8], 1
    %309 = vsyncpa %s308, 1

</llo_original>
